<compile_context>
chip_gen: v6e
topology: v6e:2x2x1
jax: 0.10.0
libtpu: 0.0.40
codegen_flags: <defaults>
</compile_context>

<pallas_src>
import functools

import jax
import jax.numpy as jnp
from jax import lax
from jax.experimental import pallas as pl
from jax.experimental.pallas import tpu as pltpu


def _round_up(x, m):
    return ((x + m - 1) // m) * m


def _pick_tb(batch):
    """Batch tile size.

    - As large as practical: per-grid-step overhead is ~0.35us and the time
      loop re-pays MXU fill/drain latency every step, while the activation
      footprint (TB*(D+H)*4B) is tiny even for v7x's 64 MiB VMEM.
    - Aim for >=2 grid steps once B is big so dimension_semantics=("parallel",)
      can shard the batch across v7x's two TensorCores.
    - Multiple of 16 whenever we actually tile, so bf16 activation blocks are
      sublane-aligned and the tile splits into two 8-row-aligned sub-chains.
    """
    if batch < 16:
        return batch                        # single tiny block (full-dim exempt)
    tb = _round_up(-(-batch // 2), 16)      # >=2 grid steps for B >= 17
    return min(tb, 1024)


def _rnn_1tm_kernel(seq_length, unroll, split,
                    x_ref, h0_ref,
                    wih_ref, whh_ref, wrec_ref, wl_ref,
                    b0_ref, brec_ref, bl_ref,
                    out_ref):
    # Weights arrive as bf16 (single-pass MXU matmuls); biases, accumulation
    # and tanh stay f32 (v5e VPU/EUP have no bf16 elementwise support).
    wih = wih_ref[...]            # (D, H)  bf16   = W_ih^T
    whh = whh_ref[...]            # (H, H)  bf16   = W_hh^T
    wrec = wrec_ref[...]          # (H, H)  bf16   = Wl^T@Wih^T + Whh^T (folded)
    wl = wl_ref[...]              # (H, D)  bf16   = W_lin^T
    b0 = b0_ref[...]              # (1, H)  f32    = b_ih + b_hh
    bl = bl_ref[...]              # (1, D)  f32    = b_lin

    x = x_ref[...]                # (TB, D) bf16 (cast in the wrapper)
    h0 = h0_ref[...]              # (TB, H) bf16

    # Step 1: h = tanh(x @ Wih^T + h0 @ Whh^T + (b_ih + b_hh))
    z = (jnp.dot(x, wih, preferred_element_type=jnp.float32)
         + jnp.dot(h0, whh, preferred_element_type=jnp.float32)
         + b0)
    h = jnp.tanh(z)               # (TB, H) f32

    tb, hdim = h.shape

    # Steps 2..seq_length with the Linear folded into the recurrence:
    #   out_t = h_t @ Wl^T + b_l  =>  h_{t+1} = tanh(h_t @ W_rec + b_rec)
    # The chain is latency-bound (MXU -> bias add -> EUP, strictly serial), so
    # when the tile allows we split it into two independent sub-chains and
    # advance both per loop iteration: one sub-chain's matmul overlaps the
    # other's tanh (MXU and EUP are separate VLIW slots).
    if split:
        half = tb // 2
        brec_h = jnp.broadcast_to(brec_ref[...], (half, hdim))   # hoisted
        ha = h[:half]
        hb = h[half:]

        def step(_, carry):
            a, b = carry
            za = jnp.dot(a.astype(jnp.bfloat16), wrec,
                         preferred_element_type=jnp.float32) + brec_h
            zb = jnp.dot(b.astype(jnp.bfloat16), wrec,
                         preferred_element_type=jnp.float32) + brec_h
            return jnp.tanh(za), jnp.tanh(zb)

        ha, hb = lax.fori_loop(0, seq_length - 1, step, (ha, hb),
                               unroll=unroll)

        # Final output Linear applied once after the loop, per sub-chain.
        out_a = jnp.dot(ha.astype(jnp.bfloat16), wl,
                        preferred_element_type=jnp.float32) + bl
        out_b = jnp.dot(hb.astype(jnp.bfloat16), wl,
                        preferred_element_type=jnp.float32) + bl
        out_ref[pl.ds(0, half), :] = out_a.astype(out_ref.dtype)
        out_ref[pl.ds(half, half), :] = out_b.astype(out_ref.dtype)
    else:
        brec = jnp.broadcast_to(brec_ref[...], (tb, hdim))        # hoisted

        def step(_, hh):
            zz = jnp.dot(hh.astype(jnp.bfloat16), wrec,
                         preferred_element_type=jnp.float32) + brec
            return jnp.tanh(zz)

        h = lax.fori_loop(0, seq_length - 1, step, h, unroll=unroll)

        out = jnp.dot(h.astype(jnp.bfloat16), wl,
                      preferred_element_type=jnp.float32) + bl
        out_ref[...] = out.astype(out_ref.dtype)


def rnn_1tm_forward(x, h0, c0, params, seq_length):
    """Pallas wrapper. c0 is accepted for API parity but unused (type_rnn='RNN')."""
    del c0
    wih_t, whh_t, b_ih, b_hh, wl_t, b_l = params
    B, D = x.shape
    _, H = h0.shape
    out_dtype = x.dtype

    if seq_length <= 0:        # module returns the input unchanged
        return x

    # --- one-time algebraic precompute (tiny, f32, done in XLA) -------------
    wrec = wl_t @ wih_t + whh_t                        # (H, H)
    b0 = (b_ih + b_hh).reshape(1, H)                   # (1, H)
    brec = (b_l @ wih_t + b_ih + b_hh).reshape(1, H)   # (1, H)
    bl2 = b_l.reshape(1, D)                            # (1, D)

    # bf16 weights AND activations (halved DMA bytes, no in-kernel repack of
    # x/h0); accumulation and elementwise math stay f32 inside the kernel.
    to_bf16 = lambda a: a.astype(jnp.bfloat16)
    wih_b, whh_b, wrec_b, wl_b = map(to_bf16, (wih_t, whh_t, wrec, wl_t))
    x_b, h0_b = to_bf16(x), to_bf16(h0)

    # --- batch-parallel grid; weights stay VMEM-resident (constant index map) -
    TB = _pick_tb(B)
    grid = (pl.cdiv(B, TB),)
    split = (TB >= 16) and (TB % 16 == 0)

    row_spec = lambda d: pl.BlockSpec((TB, d), lambda b: (b, 0))
    fixed = lambda a: pl.BlockSpec(a.shape, lambda b: (0,) * a.ndim)

    unroll = max(1, min(seq_length - 1, 8))
    kernel = functools.partial(_rnn_1tm_kernel, seq_length, unroll, split)

    # Advisory cost hint so XLA schedules neighbouring ops around the call.
    flops = (2 * B * H * (D + H)                        # first RNN-cell step
             + 2 * B * H * H * max(seq_length - 1, 0)   # folded recurrence
             + 2 * B * H * D)                           # final Linear
    transcendentals = B * H * seq_length
    nsteps = pl.cdiv(B, TB)
    weight_bytes = 2 * (D * H + 2 * H * H + H * D) + 4 * (2 * H + D)
    bytes_accessed = (2 * B * (D + H)                   # bf16 activations in
                      + 4 * B * D                       # f32 output
                      + nsteps * weight_bytes)          # weights per grid step
    cost = pl.CostEstimate(flops=int(flops),
                           transcendentals=int(transcendentals),
                           bytes_accessed=int(bytes_accessed))

    return pl.pallas_call(
        kernel,
        out_shape=jax.ShapeDtypeStruct((B, D), out_dtype),
        grid=grid,
        in_specs=[row_spec(D), row_spec(H),
                  fixed(wih_b), fixed(whh_b), fixed(wrec_b), fixed(wl_b),
                  fixed(b0), fixed(brec), fixed(bl2)],
        out_specs=row_spec(D),
        compiler_params=pltpu.CompilerParams(
            dimension_semantics=("parallel",)),
        cost_estimate=cost,
    )(x_b, h0_b, wih_b, whh_b, wrec_b, wl_b, b0, brec, bl2)


def init_params(key, input_dim, hidden_dim):
    """Deterministic init mimicking PyTorch's uniform(-1/sqrt(H), 1/sqrt(H))."""
    ks = jax.random.split(key, 8)
    bnd = 1.0 / jnp.sqrt(hidden_dim)
    u = lambda k, shape: jax.random.uniform(k, shape, jnp.float32, -bnd, bnd)
    # Stored already transposed for the kernel's (row, col) matmuls.
    wih_t = u(ks[0], (input_dim, hidden_dim))    # = W_ih^T
    whh_t = u(ks[1], (hidden_dim, hidden_dim))   # = W_hh^T
    b_ih = u(ks[2], (hidden_dim,))
    b_hh = u(ks[3], (hidden_dim,))
    wl_t = u(ks[4], (hidden_dim, input_dim))     # = W_lin^T
    b_l = u(ks[5], (input_dim,))
    return (wih_t, whh_t, b_ih, b_hh, wl_t, b_l)


def rnn_1tm_reference(x, h0, params, seq_length):
    """Pure-JAX f32 reference matching the original (un-folded) module."""
    wih_t, whh_t, b_ih, b_hh, wl_t, b_l = params
    out, h = x, h0
    for _ in range(seq_length):
        h = jnp.tanh(out @ wih_t + b_ih + h @ whh_t + b_hh)
        out = h @ wl_t + b_l
    return out


if __name__ == "__main__":
    batch = 2
    input_dim = 16
    hidden_dim = 32
    seq_length = 8

    key = jax.random.PRNGKey(0)
    kx, kh, kc, kp = jax.random.split(key, 4)
    x = jax.random.normal(kx, (batch, input_dim), jnp.float32)
    h0 = jax.random.normal(kh, (batch, hidden_dim), jnp.float32)
    c0 = jax.random.normal(kc, (batch, hidden_dim), jnp.float32)  # unused ('RNN')
    params = init_params(kp, input_dim, hidden_dim)

    out = rnn_1tm_forward(x, h0, c0, params, seq_length)
    out = jax.block_until_ready(out)

    ref = rnn_1tm_reference(x, h0, params, seq_length)
    assert out.shape == (batch, input_dim)
    # bf16 MXU operands + the algebraic fold of the Linear into the recurrence
    # perturb numerics slightly vs. the pure-f32 reference -> loosened tolerance.
    # TODO(synk): for accuracy-sensitive configs (long seq_length / large H),
    # switch the recurrence matmul to f32 operands; it is tiny so cost is ~nil.
    assert jnp.allclose(out, ref, atol=5e-2, rtol=5e-2), "mismatch vs reference"

    print("KERNEL_OK")
</pallas_src>

<mosaic_0001>
module attributes {stable_mosaic.version = 11 : i64} {
  func.func @_rnn_1tm_kernel(%arg0: i32, %arg1: memref<2x16xbf16, #tpu.memory_space<vmem>>, %arg2: memref<2x32xbf16, #tpu.memory_space<vmem>>, %arg3: memref<16x32xbf16, #tpu.memory_space<vmem>>, %arg4: memref<32x32xbf16, #tpu.memory_space<vmem>>, %arg5: memref<32x32xbf16, #tpu.memory_space<vmem>>, %arg6: memref<32x16xbf16, #tpu.memory_space<vmem>>, %arg7: memref<1x32xf32, #tpu.memory_space<vmem>>, %arg8: memref<1x32xf32, #tpu.memory_space<vmem>>, %arg9: memref<1x16xf32, #tpu.memory_space<vmem>>, %arg10: memref<2x16xf32, #tpu.memory_space<vmem>>) attributes {dimension_semantics = [#tpu.dimension_semantics<parallel>], iteration_bounds = array<i64: 1>, scalar_prefetch = 0 : i64, scratch_operands = 0 : i64, tpu.core_type = #tpu.core_type<tc>, window_params = [{transform_indices = @transform_0, window_bounds = array<i64: 2, 16>}, {transform_indices = @transform_1, window_bounds = array<i64: 2, 32>}, {pipeline_mode = #tpu.pipeline_mode<synchronous>, transform_indices = @transform_2, window_bounds = array<i64: 16, 32>}, {pipeline_mode = #tpu.pipeline_mode<synchronous>, transform_indices = @transform_3, window_bounds = array<i64: 32, 32>}, {pipeline_mode = #tpu.pipeline_mode<synchronous>, transform_indices = @transform_4, window_bounds = array<i64: 32, 32>}, {pipeline_mode = #tpu.pipeline_mode<synchronous>, transform_indices = @transform_5, window_bounds = array<i64: 32, 16>}, {pipeline_mode = #tpu.pipeline_mode<synchronous>, transform_indices = @transform_6, window_bounds = array<i64: 1, 32>}, {pipeline_mode = #tpu.pipeline_mode<synchronous>, transform_indices = @transform_7, window_bounds = array<i64: 1, 32>}, {pipeline_mode = #tpu.pipeline_mode<synchronous>, transform_indices = @transform_8, window_bounds = array<i64: 1, 16>}, {transform_indices = @transform_9, window_bounds = array<i64: 2, 16>}]} {
    %c0 = arith.constant 0 : index
    %c0_0 = arith.constant 0 : index
    %0 = vector.load %arg3[%c0, %c0_0] : memref<16x32xbf16, #tpu.memory_space<vmem>>, vector<16x32xbf16>
    %c0_1 = arith.constant 0 : index
    %c0_2 = arith.constant 0 : index
    %1 = vector.load %arg4[%c0_1, %c0_2] : memref<32x32xbf16, #tpu.memory_space<vmem>>, vector<32x32xbf16>
    %c0_3 = arith.constant 0 : index
    %c0_4 = arith.constant 0 : index
    %2 = vector.load %arg5[%c0_3, %c0_4] : memref<32x32xbf16, #tpu.memory_space<vmem>>, vector<32x32xbf16>
    %c0_5 = arith.constant 0 : index
    %c0_6 = arith.constant 0 : index
    %3 = vector.load %arg6[%c0_5, %c0_6] : memref<32x16xbf16, #tpu.memory_space<vmem>>, vector<32x16xbf16>
    %c0_7 = arith.constant 0 : index
    %c0_8 = arith.constant 0 : index
    %4 = vector.load %arg7[%c0_7, %c0_8] : memref<1x32xf32, #tpu.memory_space<vmem>>, vector<1x32xf32>
    %c0_9 = arith.constant 0 : index
    %c0_10 = arith.constant 0 : index
    %5 = vector.load %arg9[%c0_9, %c0_10] : memref<1x16xf32, #tpu.memory_space<vmem>>, vector<1x16xf32>
    %c0_11 = arith.constant 0 : index
    %c0_12 = arith.constant 0 : index
    %6 = vector.load %arg1[%c0_11, %c0_12] : memref<2x16xbf16, #tpu.memory_space<vmem>>, vector<2x16xbf16>
    %c0_13 = arith.constant 0 : index
    %c0_14 = arith.constant 0 : index
    %7 = vector.load %arg2[%c0_13, %c0_14] : memref<2x32xbf16, #tpu.memory_space<vmem>>, vector<2x32xbf16>
    %cst = arith.constant dense<0.000000e+00> : vector<2x32xf32>
    %8 = tpu.matmul %6, %0, %cst {dimension_numbers = #tpu.dot_dimension_numbers<[1], [0], [0], [1], [0, 0, 1, 1], [], []>} : vector<2x16xbf16>, vector<16x32xbf16>, vector<2x32xf32> -> vector<2x32xf32>
    %cst_15 = arith.constant dense<0.000000e+00> : vector<2x32xf32>
    %9 = tpu.matmul %7, %1, %cst_15 {dimension_numbers = #tpu.dot_dimension_numbers<[1], [0], [0], [1], [0, 0, 1, 1], [], []>} : vector<2x32xbf16>, vector<32x32xbf16>, vector<2x32xf32> -> vector<2x32xf32>
    %10 = arith.addf %8, %9 : vector<2x32xf32>
    %11 = vector.broadcast %4 : vector<1x32xf32> to vector<2x32xf32>
    %12 = arith.addf %10, %11 : vector<2x32xf32>
    %13 = math.tanh %12 : vector<2x32xf32>
    %c0_16 = arith.constant 0 : index
    %c0_17 = arith.constant 0 : index
    %14 = vector.load %arg8[%c0_16, %c0_17] : memref<1x32xf32, #tpu.memory_space<vmem>>, vector<1x32xf32>
    %15 = vector.shape_cast %14 : vector<1x32xf32> to vector<1x32xf32>
    %16 = vector.broadcast %15 : vector<1x32xf32> to vector<2x32xf32>
    %c0_i32 = arith.constant 0 : i32
    %17 = arith.truncf %13 : vector<2x32xf32> to vector<2x32xbf16>
    %cst_18 = arith.constant dense<0.000000e+00> : vector<2x32xf32>
    %18 = tpu.matmul %17, %2, %cst_18 {dimension_numbers = #tpu.dot_dimension_numbers<[1], [0], [0], [1], [0, 0, 1, 1], [], []>} : vector<2x32xbf16>, vector<32x32xbf16>, vector<2x32xf32> -> vector<2x32xf32>
    %19 = arith.addf %18, %16 : vector<2x32xf32>
    %20 = math.tanh %19 : vector<2x32xf32>
    %c1_i32 = arith.constant 1 : i32
    %21 = arith.truncf %20 : vector<2x32xf32> to vector<2x32xbf16>
    %cst_19 = arith.constant dense<0.000000e+00> : vector<2x32xf32>
    %22 = tpu.matmul %21, %2, %cst_19 {dimension_numbers = #tpu.dot_dimension_numbers<[1], [0], [0], [1], [0, 0, 1, 1], [], []>} : vector<2x32xbf16>, vector<32x32xbf16>, vector<2x32xf32> -> vector<2x32xf32>
    %23 = arith.addf %22, %16 : vector<2x32xf32>
    %24 = math.tanh %23 : vector<2x32xf32>
    %c2_i32 = arith.constant 2 : i32
    %25 = arith.truncf %24 : vector<2x32xf32> to vector<2x32xbf16>
    %cst_20 = arith.constant dense<0.000000e+00> : vector<2x32xf32>
    %26 = tpu.matmul %25, %2, %cst_20 {dimension_numbers = #tpu.dot_dimension_numbers<[1], [0], [0], [1], [0, 0, 1, 1], [], []>} : vector<2x32xbf16>, vector<32x32xbf16>, vector<2x32xf32> -> vector<2x32xf32>
    %27 = arith.addf %26, %16 : vector<2x32xf32>
    %28 = math.tanh %27 : vector<2x32xf32>
    %c3_i32 = arith.constant 3 : i32
    %29 = arith.truncf %28 : vector<2x32xf32> to vector<2x32xbf16>
    %cst_21 = arith.constant dense<0.000000e+00> : vector<2x32xf32>
    %30 = tpu.matmul %29, %2, %cst_21 {dimension_numbers = #tpu.dot_dimension_numbers<[1], [0], [0], [1], [0, 0, 1, 1], [], []>} : vector<2x32xbf16>, vector<32x32xbf16>, vector<2x32xf32> -> vector<2x32xf32>
    %31 = arith.addf %30, %16 : vector<2x32xf32>
    %32 = math.tanh %31 : vector<2x32xf32>
    %c4_i32 = arith.constant 4 : i32
    %33 = arith.truncf %32 : vector<2x32xf32> to vector<2x32xbf16>
    %cst_22 = arith.constant dense<0.000000e+00> : vector<2x32xf32>
    %34 = tpu.matmul %33, %2, %cst_22 {dimension_numbers = #tpu.dot_dimension_numbers<[1], [0], [0], [1], [0, 0, 1, 1], [], []>} : vector<2x32xbf16>, vector<32x32xbf16>, vector<2x32xf32> -> vector<2x32xf32>
    %35 = arith.addf %34, %16 : vector<2x32xf32>
    %36 = math.tanh %35 : vector<2x32xf32>
    %c5_i32 = arith.constant 5 : i32
    %37 = arith.truncf %36 : vector<2x32xf32> to vector<2x32xbf16>
    %cst_23 = arith.constant dense<0.000000e+00> : vector<2x32xf32>
    %38 = tpu.matmul %37, %2, %cst_23 {dimension_numbers = #tpu.dot_dimension_numbers<[1], [0], [0], [1], [0, 0, 1, 1], [], []>} : vector<2x32xbf16>, vector<32x32xbf16>, vector<2x32xf32> -> vector<2x32xf32>
    %39 = arith.addf %38, %16 : vector<2x32xf32>
    %40 = math.tanh %39 : vector<2x32xf32>
    %c6_i32 = arith.constant 6 : i32
    %41 = arith.truncf %40 : vector<2x32xf32> to vector<2x32xbf16>
    %cst_24 = arith.constant dense<0.000000e+00> : vector<2x32xf32>
    %42 = tpu.matmul %41, %2, %cst_24 {dimension_numbers = #tpu.dot_dimension_numbers<[1], [0], [0], [1], [0, 0, 1, 1], [], []>} : vector<2x32xbf16>, vector<32x32xbf16>, vector<2x32xf32> -> vector<2x32xf32>
    %43 = arith.addf %42, %16 : vector<2x32xf32>
    %44 = math.tanh %43 : vector<2x32xf32>
    %45 = arith.truncf %44 : vector<2x32xf32> to vector<2x32xbf16>
    %cst_25 = arith.constant dense<0.000000e+00> : vector<2x16xf32>
    %46 = tpu.matmul %45, %3, %cst_25 {dimension_numbers = #tpu.dot_dimension_numbers<[1], [0], [0], [1], [0, 0, 1, 1], [], []>} : vector<2x32xbf16>, vector<32x16xbf16>, vector<2x16xf32> -> vector<2x16xf32>
    %47 = vector.broadcast %5 : vector<1x16xf32> to vector<2x16xf32>
    %48 = arith.addf %46, %47 : vector<2x16xf32>
    %c0_26 = arith.constant 0 : index
    %c0_27 = arith.constant 0 : index
    %49 = vector.load %arg10[%c0_26, %c0_27] : memref<2x16xf32, #tpu.memory_space<vmem>>, vector<2x16xf32>
    tpu.vector_store %arg10[%c0_26, %c0_27], %48 {strides = array<i32>} : memref<2x16xf32, #tpu.memory_space<vmem>>, vector<2x16xf32>,
    return
  }
  func.func @transform_0(%arg0: i32) -> (i32, i32) {
    %c0_i32 = arith.constant 0 : i32
    %c0_i32_0 = arith.constant 0 : i32
    return %arg0, %c0_i32 : i32, i32
  }
  func.func @transform_1(%arg0: i32) -> (i32, i32) {
    %c0_i32 = arith.constant 0 : i32
    %c0_i32_0 = arith.constant 0 : i32
    return %arg0, %c0_i32 : i32, i32
  }
  func.func @transform_2(%arg0: i32) -> (i32, i32) {
    %c0_i32 = arith.constant 0 : i32
    %c0_i32_0 = arith.constant 0 : i32
    %c0_i32_1 = arith.constant 0 : i32
    return %c0_i32, %c0_i32_0 : i32, i32
  }
  func.func @transform_3(%arg0: i32) -> (i32, i32) {
    %c0_i32 = arith.constant 0 : i32
    %c0_i32_0 = arith.constant 0 : i32
    %c0_i32_1 = arith.constant 0 : i32
    return %c0_i32, %c0_i32_0 : i32, i32
  }
  func.func @transform_4(%arg0: i32) -> (i32, i32) {
    %c0_i32 = arith.constant 0 : i32
    %c0_i32_0 = arith.constant 0 : i32
    %c0_i32_1 = arith.constant 0 : i32
    return %c0_i32, %c0_i32_0 : i32, i32
  }
  func.func @transform_5(%arg0: i32) -> (i32, i32) {
    %c0_i32 = arith.constant 0 : i32
    %c0_i32_0 = arith.constant 0 : i32
    %c0_i32_1 = arith.constant 0 : i32
    return %c0_i32, %c0_i32_0 : i32, i32
  }
  func.func @transform_6(%arg0: i32) -> (i32, i32) {
    %c0_i32 = arith.constant 0 : i32
    %c0_i32_0 = arith.constant 0 : i32
    %c0_i32_1 = arith.constant 0 : i32
    return %c0_i32, %c0_i32_0 : i32, i32
  }
  func.func @transform_7(%arg0: i32) -> (i32, i32) {
    %c0_i32 = arith.constant 0 : i32
    %c0_i32_0 = arith.constant 0 : i32
    %c0_i32_1 = arith.constant 0 : i32
    return %c0_i32, %c0_i32_0 : i32, i32
  }
  func.func @transform_8(%arg0: i32) -> (i32, i32) {
    %c0_i32 = arith.constant 0 : i32
    %c0_i32_0 = arith.constant 0 : i32
    %c0_i32_1 = arith.constant 0 : i32
    return %c0_i32, %c0_i32_0 : i32, i32
  }
  func.func @transform_9(%arg0: i32) -> (i32, i32) {
    %c0_i32 = arith.constant 0 : i32
    %c0_i32_0 = arith.constant 0 : i32
    return %arg0, %c0_i32 : i32, i32
  }
}

</mosaic_0001>

<llo_original>
// kernel: tpu_custom_call.1
$region0: #{tpu_custom_call.1}
  #allocation0 [shape = 'u32[]', space=smem, size = 0x4, offset = 0x4, fixed_abs, tag = 'smem constant byte address 0x4 - core index']
  #allocation1 [shape = 'u32[144,128]{1,0:T(1,128)}', space=vmem, size = 0x12000, scoped, tag = 'internal scratch']
  %s0 = inlined_call_operand.vmem [shape: bf16[2,16], index: 0, kind: input, shape index: {}]
  %s1 = inlined_call_operand.hbm [shape: bf16[2,32], index: 1, kind: input, shape index: {}]
  %s2 = inlined_call_operand.vmem [shape: bf16[16,32], index: 2, kind: input, shape index: {}]
  %s3 = inlined_call_operand.vmem [shape: bf16[32,32], index: 3, kind: input, shape index: {}]
  %s4 = inlined_call_operand.hbm [shape: bf16[32,32], index: 4, kind: input, shape index: {}]
  %s5 = inlined_call_operand.vmem [shape: bf16[32,16], index: 5, kind: input, shape index: {}]
  %s6 = inlined_call_operand.vmem [shape: f32[1,32], index: 6, kind: input, shape index: {}]
  %s7 = inlined_call_operand.vmem [shape: f32[1,32], index: 7, kind: input, shape index: {}]
  %s8 = inlined_call_operand.vmem [shape: f32[1,16], index: 8, kind: input, shape index: {}]
  %s9 = inlined_call_operand.hbm [shape: f32[2,16], index: 9, kind: output, shape index: {}]
  %s10 = sld [smem:[#allocation0]]
  $region54: #{tpu_custom_call.1} parent=0
    _
  %s12 = ssub.s32 1, %s10
  %s13 = scalar_select 0, %s12, %s10
  $region1: #{tpu_custom_call.1} parent=0
    #allocation2 [shape = 'u8[512]{0}', space=vmem, size = 0x400, scoped, tag = 'input window, operand 1, single buffered']
    #allocation3 [shape = 's32[1]{0}', space=sflag, size = 0x4, scoped, tag = 'scoped memory for tpu_custom_call.1']
    #allocation4 [shape = 's32[1]{0}', space=sflag, size = 0x4, scoped, tag = 'scoped memory for tpu_custom_call.1']
    #allocation5 [shape = 'u8[8192]{0}', space=vmem, size = 0x2000, scoped, tag = 'input window, operand 4, single buffered']
    #allocation6 [shape = 's32[1]{0}', space=sflag, size = 0x4, scoped, tag = 'scoped memory for tpu_custom_call.1']
    #allocation7 [shape = 'u8[1024]{0}', space=vmem, size = 0x400, scoped, tag = 'output window, operand 0, single buffered']
    %14 = vsyncpa [#allocation3], 0
    %15 = vsyncpa [#allocation6], 0
    %16 = vsyncpa [#allocation4], 0
    // Predicated region
    $region2: #{tpu_custom_call.1} parent=1 // pred_check
      _
    $region3: #{tpu_custom_call.1} parent=1 // pred_check_branch
      %18 = sbr.rel (0) target = $region5
    $region4: #{tpu_custom_call.1} parent=1 // pred_region
      _
    $region5: #{tpu_custom_call.1} parent=1 // pred_fallthru
      _
    // Predicated region
    $region6: #{tpu_custom_call.1} parent=1 // pred_check
      _
    $region7: #{tpu_custom_call.1} parent=1 // pred_check_branch
      %20 = sbr.rel (0) target = $region9
    $region8: #{tpu_custom_call.1} parent=1 // pred_region
      %s22 = ssub.s32 16, 16
      %23 = vsyncadd [#allocation3], %s22
      %s25 = sshll.u32 [#allocation2], 4
      %s26 = int_to_ptr.vmem [resolvable:$true] %s25
      %28 = dma.hbm_to_vmem [thread:$0]  %s1, 16, %s26, [#allocation3]
    $region9: #{tpu_custom_call.1} parent=1 // pred_fallthru
      _
    // Predicated region
    $region10: #{tpu_custom_call.1} parent=1 // pred_check
      _
    $region11: #{tpu_custom_call.1} parent=1 // pred_check_branch
      %30 = sbr.rel (0) target = $region13
    $region12: #{tpu_custom_call.1} parent=1 // pred_region
      _
    $region13: #{tpu_custom_call.1} parent=1 // pred_fallthru
      _
    // Predicated region
    $region14: #{tpu_custom_call.1} parent=1 // pred_check
      _
    $region15: #{tpu_custom_call.1} parent=1 // pred_check_branch
      %32 = sbr.rel (0) target = $region17
    $region16: #{tpu_custom_call.1} parent=1 // pred_region
      _
    $region17: #{tpu_custom_call.1} parent=1 // pred_fallthru
      _
    // Predicated region
    $region18: #{tpu_custom_call.1} parent=1 // pred_check
      _
    $region19: #{tpu_custom_call.1} parent=1 // pred_check_branch
      %34 = sbr.rel (0) target = $region21
    $region20: #{tpu_custom_call.1} parent=1 // pred_region
      %s36 = ssub.s32 256, 256
      %37 = vsyncadd [#allocation6], %s36
      %s38 = sshll.u32 [#allocation5], 4
      %s39 = int_to_ptr.vmem [resolvable:$true] %s38
      %44 = dma.hbm_to_vmem [thread:$0]  %s4, 256, %s39, [#allocation6], 64, 64, 4
    $region21: #{tpu_custom_call.1} parent=1 // pred_fallthru
      _
    // Predicated region
    $region22: #{tpu_custom_call.1} parent=1 // pred_check
      _
    $region23: #{tpu_custom_call.1} parent=1 // pred_check_branch
      %46 = sbr.rel (0) target = $region25
    $region24: #{tpu_custom_call.1} parent=1 // pred_region
      _
    $region25: #{tpu_custom_call.1} parent=1 // pred_fallthru
      _
    // Predicated region
    $region26: #{tpu_custom_call.1} parent=1 // pred_check
      _
    $region27: #{tpu_custom_call.1} parent=1 // pred_check_branch
      %48 = sbr.rel (0) target = $region29
    $region28: #{tpu_custom_call.1} parent=1 // pred_region
      _
    $region29: #{tpu_custom_call.1} parent=1 // pred_fallthru
      _
    // Predicated region
    $region30: #{tpu_custom_call.1} parent=1 // pred_check
      _
    $region31: #{tpu_custom_call.1} parent=1 // pred_check_branch
      %50 = sbr.rel (0) target = $region33
    $region32: #{tpu_custom_call.1} parent=1 // pred_region
      _
    $region33: #{tpu_custom_call.1} parent=1 // pred_fallthru
      _
    // Predicated region
    $region34: #{tpu_custom_call.1} parent=1 // pred_check
      _
    $region35: #{tpu_custom_call.1} parent=1 // pred_check_branch
      %52 = sbr.rel (0) target = $region37
    $region36: #{tpu_custom_call.1} parent=1 // pred_region
      _
    $region37: #{tpu_custom_call.1} parent=1 // pred_fallthru
      _
    // Predicated region
    $region38: #{tpu_custom_call.1} parent=1 // pred_check
      _
    $region39: #{tpu_custom_call.1} parent=1 // pred_check_branch
      %54 = sbr.rel (0) target = $region41
    $region40: #{tpu_custom_call.1} parent=1 // pred_region
      %55 = dma.done [#allocation3], 16
    $region41: #{tpu_custom_call.1} parent=1 // pred_fallthru
      _
    // Predicated region
    $region42: #{tpu_custom_call.1} parent=1 // pred_check
      _
    $region43: #{tpu_custom_call.1} parent=1 // pred_check_branch
      %57 = sbr.rel (0) target = $region45
    $region44: #{tpu_custom_call.1} parent=1 // pred_region
      %58 = dma.done [#allocation6], 256
    $region45: #{tpu_custom_call.1} parent=1 // pred_fallthru
      _
    %v60 = vld [vmem:[%s2] sm:$0xf]
    %v61 = vld [vmem:[%s2 + $0x4] sm:$0xf]
    %v62 = vld [vmem:[%s3] sm:$0xf]
    %v63 = vld [vmem:[%s3 + $0x4] sm:$0xf]
    %v64 = vld [vmem:[%s3 + $0x8] sm:$0xf]
    %v65 = vld [vmem:[%s3 + $0xc] sm:$0xf]
    %v66 = vld [vmem:[#allocation5] sm:$0xf]
    %v67 = vld [vmem:[#allocation5 + $0x4] sm:$0xf]
    %v68 = vld [vmem:[#allocation5 + $0x8] sm:$0xf]
    %v69 = vld [vmem:[#allocation5 + $0xc] sm:$0xf]
    %v70 = vld [vmem:[%s5] sm:$0xf]
    %v71 = vld [vmem:[%s5 + $0x4] sm:$0xf]
    %v72 = vld [vmem:[%s5 + $0x8] sm:$0xf]
    %v73 = vld [vmem:[%s5 + $0xc] sm:$0xf]
    %v74 = vld [vmem:[%s6] sm:$0x1]
    %v75 = vld [vmem:[%s8] sm:$0x1]
    %v76 = vld [vmem:[%s0] sm:$0x1]
    %v77 = vld [vmem:[#allocation2] sm:$0x1]
    %v82 = vunpack.c.l.b16 %v62
    %v83 = vunpack.c.l.b16 %v63
    %v84 = vunpack.c.l.b16 %v64
    %v85 = vunpack.c.l.b16 %v65
    %v86 = vpack.c.b16 %v83, %v82
    %v87 = vpack.c.b16 %v85, %v84
    %vm90 = vcmask 261120
    %v92 = vsel %vm90, %v77, 0
    %94 = vmatprep.subr.bf16.mxu0 0
    %95 = vmatpush1.bf16.msra.mxu0 0
    %96 = vmatprep.subr.bf16.mxu0 0
    %97 = vmatpush1.bf16.msra.mxu0 0
    %98 = vmatprep.subr.bf16.mxu0 0
    %99 = vmatpush1.bf16.msra.mxu0 0
    %100 = vmatprep.subr.bf16.mxu0 0
    %101 = vmatpush1.bf16.msra.mxu0 0
    %102 = vmatprep.subr.bf16.mxu0 0
    %103 = vmatpush1.bf16.msra.mxu0 0
    %104 = vmatprep.subr.bf16.mxu0 0
    %105 = vmatpush1.bf16.msra.mxu0 0
    %106 = vmatprep.subr.bf16.mxu0 0
    %107 = vmatpush1.bf16.msra.mxu0 %v87
    %108 = vmatprep.subr.bf16.mxu0 0
    %109 = vmatpush1.bf16.msra.mxu0 %v86
    %110 = vmatprep.subr.bf16.mxu0 0
    %111 = vmatpush2.bf16.msra.mxu0 0
    %112 = vmatprep.subr.bf16.mxu0 0
    %113 = vmatpush2.bf16.msra.mxu0 0
    %114 = vmatprep.subr.bf16.mxu0 0
    %115 = vmatpush2.bf16.msra.mxu0 0
    %116 = vmatprep.subr.bf16.mxu0 0
    %117 = vmatpush2.bf16.msra.mxu0 0
    %118 = vmatprep.subr.bf16.mxu0 0
    %119 = vmatpush2.bf16.msra.mxu0 0
    %120 = vmatprep.subr.bf16.mxu0 0
    %121 = vmatpush2.bf16.msra.mxu0 0
    %122 = vmatprep.subr.bf16.mxu0 0
    %123 = vmatpush2.bf16.msra.mxu0 0
    %124 = vmatprep.subr.bf16.mxu0 0
    %125 = vmatpush2.bf16.msra.mxu0 0
    %126 = vmatprep.mubr.bf16.mxu0 0
    %127 = vmatmul.mubr.bf16.gmra.mxu0 %v92
    %v128 = vpop.f32.mrf.mxu0
    %v129 = vadd.f32 0.0, %v128
    %v130 = vpop.f32.mrf.mxu0
    %v131 = vpop.f32.mrf.mxu0
    %v132 = vpop.f32.mrf.mxu0
    %133 = vdwg.mxu0
    %v136 = vunpack.c.l.b16 %v60
    %v137 = vunpack.c.l.b16 %v61
    %v138 = vpack.c.b16 %v137, %v136
    %vm140 = vcmask 130048
    %v142 = vsel %vm140, %v76, 0
    %144 = vmatprep.subr.bf16.mxu0 0
    %145 = vmatpush1.bf16.msra.mxu0 0
    %146 = vmatprep.subr.bf16.mxu0 0
    %147 = vmatpush1.bf16.msra.mxu0 0
    %148 = vmatprep.subr.bf16.mxu0 0
    %149 = vmatpush1.bf16.msra.mxu0 0
    %150 = vmatprep.subr.bf16.mxu0 0
    %151 = vmatpush1.bf16.msra.mxu0 0
    %152 = vmatprep.subr.bf16.mxu0 0
    %153 = vmatpush1.bf16.msra.mxu0 0
    %154 = vmatprep.subr.bf16.mxu0 0
    %155 = vmatpush1.bf16.msra.mxu0 0
    %156 = vmatprep.subr.bf16.mxu0 0
    %157 = vmatpush1.bf16.msra.mxu0 0
    %158 = vmatprep.subr.bf16.mxu0 0
    %159 = vmatpush1.bf16.msra.mxu0 %v138
    %160 = vmatprep.subr.bf16.mxu0 0
    %161 = vmatpush2.bf16.msra.mxu0 0
    %162 = vmatprep.subr.bf16.mxu0 0
    %163 = vmatpush2.bf16.msra.mxu0 0
    %164 = vmatprep.subr.bf16.mxu0 0
    %165 = vmatpush2.bf16.msra.mxu0 0
    %166 = vmatprep.subr.bf16.mxu0 0
    %167 = vmatpush2.bf16.msra.mxu0 0
    %168 = vmatprep.subr.bf16.mxu0 0
    %169 = vmatpush2.bf16.msra.mxu0 0
    %170 = vmatprep.subr.bf16.mxu0 0
    %171 = vmatpush2.bf16.msra.mxu0 0
    %172 = vmatprep.subr.bf16.mxu0 0
    %173 = vmatpush2.bf16.msra.mxu0 0
    %174 = vmatprep.subr.bf16.mxu0 0
    %175 = vmatpush2.bf16.msra.mxu0 0
    %176 = vmatprep.mubr.bf16.mxu0 0
    %177 = vmatmul.mubr.bf16.gmra.mxu0 %v142
    %v178 = vpop.f32.mrf.mxu0
    %v179 = vadd.f32 %v129, %v178
    %v180 = vpop.f32.mrf.mxu0
    %v181 = vpop.f32.mrf.mxu0
    %v182 = vpop.f32.mrf.mxu0
    %183 = vdwg.mxu0
    %v185 = vlaneseq
    %v186 = vshrl.u32 %v185, 7
    %v187 = vsub.s32 0, %v186
    %v188 = vrot.slane %v74, %v187
    %v190 = vadd.f32 %v179, %v188
    %v191 = vtanh.pop %v190
    %v192 = vld [vmem:[%s7] sm:$0x1]
    %v194 = vlaneseq
    %v195 = vshrl.u32 %v194, 7
    %v196 = vsub.s32 0, %v195
    %v197 = vrot.slane %v192, %v196
    %v199 = vpack.c.bf16 %v191, %v191
    %v204 = vunpack.c.l.b16 %v66
    %v205 = vunpack.c.l.b16 %v67
    %v206 = vunpack.c.l.b16 %v68
    %v207 = vunpack.c.l.b16 %v69
    %v208 = vpack.c.b16 %v205, %v204
    %v209 = vpack.c.b16 %v207, %v206
    %v213 = vsel %vm90, %v199, 0
    %215 = vmatprep.subr.bf16.mxu0 0
    %216 = vmatpush1.bf16.msra.mxu0 0
    %217 = vmatprep.subr.bf16.mxu0 0
    %218 = vmatpush1.bf16.msra.mxu0 0
    %219 = vmatprep.subr.bf16.mxu0 0
    %220 = vmatpush1.bf16.msra.mxu0 0
    %221 = vmatprep.subr.bf16.mxu0 0
    %222 = vmatpush1.bf16.msra.mxu0 0
    %223 = vmatprep.subr.bf16.mxu0 0
    %224 = vmatpush1.bf16.msra.mxu0 0
    %225 = vmatprep.subr.bf16.mxu0 0
    %226 = vmatpush1.bf16.msra.mxu0 0
    %227 = vmatprep.subr.bf16.mxu0 0
    %228 = vmatpush1.bf16.msra.mxu0 %v209
    %229 = vmatprep.subr.bf16.mxu0 0
    %230 = vmatpush1.bf16.msra.mxu0 %v208
    %231 = vmatprep.subr.bf16.mxu0 0
    %232 = vmatpush2.bf16.msra.mxu0 0
    %233 = vmatprep.subr.bf16.mxu0 0
    %234 = vmatpush2.bf16.msra.mxu0 0
    %235 = vmatprep.subr.bf16.mxu0 0
    %236 = vmatpush2.bf16.msra.mxu0 0
    %237 = vmatprep.subr.bf16.mxu0 0
    %238 = vmatpush2.bf16.msra.mxu0 0
    %239 = vmatprep.subr.bf16.mxu0 0
    %240 = vmatpush2.bf16.msra.mxu0 0
    %241 = vmatprep.subr.bf16.mxu0 0
    %242 = vmatpush2.bf16.msra.mxu0 0
    %243 = vmatprep.subr.bf16.mxu0 0
    %244 = vmatpush2.bf16.msra.mxu0 0
    %245 = vmatprep.subr.bf16.mxu0 0
    %246 = vmatpush2.bf16.msra.mxu0 0
    %247 = vmatprep.mubr.bf16.mxu0 0
    %248 = vmatmul.mubr.bf16.gmra.mxu0 %v213
    %v249 = vpop.f32.mrf.mxu0
    %v250 = vadd.f32 %v197, %v249
    %v251 = vpop.f32.mrf.mxu0
    %v252 = vpop.f32.mrf.mxu0
    %v253 = vpop.f32.mrf.mxu0
    %254 = vdwg.mxu0
    %v255 = vtanh.pop %v250
    %v256 = vpack.c.bf16 %v255, %v255
    %v258 = vsel %vm90, %v256, 0
    %260 = vmatprep.subr.bf16.mxu0 0
    %261 = vmatpush1.bf16.msra.mxu0 0
    %262 = vmatprep.subr.bf16.mxu0 0
    %263 = vmatpush1.bf16.msra.mxu0 0
    %264 = vmatprep.subr.bf16.mxu0 0
    %265 = vmatpush1.bf16.msra.mxu0 0
    %266 = vmatprep.subr.bf16.mxu0 0
    %267 = vmatpush1.bf16.msra.mxu0 0
    %268 = vmatprep.subr.bf16.mxu0 0
    %269 = vmatpush1.bf16.msra.mxu0 0
    %270 = vmatprep.subr.bf16.mxu0 0
    %271 = vmatpush1.bf16.msra.mxu0 0
    %272 = vmatprep.subr.bf16.mxu0 0
    %273 = vmatpush1.bf16.msra.mxu0 %v209
    %274 = vmatprep.subr.bf16.mxu0 0
    %275 = vmatpush1.bf16.msra.mxu0 %v208
    %276 = vmatprep.subr.bf16.mxu0 0
    %277 = vmatpush2.bf16.msra.mxu0 0
    %278 = vmatprep.subr.bf16.mxu0 0
    %279 = vmatpush2.bf16.msra.mxu0 0
    %280 = vmatprep.subr.bf16.mxu0 0
    %281 = vmatpush2.bf16.msra.mxu0 0
    %282 = vmatprep.subr.bf16.mxu0 0
    %283 = vmatpush2.bf16.msra.mxu0 0
    %284 = vmatprep.subr.bf16.mxu0 0
    %285 = vmatpush2.bf16.msra.mxu0 0
    %286 = vmatprep.subr.bf16.mxu0 0
    %287 = vmatpush2.bf16.msra.mxu0 0
    %288 = vmatprep.subr.bf16.mxu0 0
    %289 = vmatpush2.bf16.msra.mxu0 0
    %290 = vmatprep.subr.bf16.mxu0 0
    %291 = vmatpush2.bf16.msra.mxu0 0
    %292 = vmatprep.mubr.bf16.mxu0 0
    %293 = vmatmul.mubr.bf16.gmra.mxu0 %v258
    %v294 = vpop.f32.mrf.mxu0
    %v295 = vadd.f32 %v197, %v294
    %v296 = vpop.f32.mrf.mxu0
    %v297 = vpop.f32.mrf.mxu0
    %v298 = vpop.f32.mrf.mxu0
    %299 = vdwg.mxu0
    %v300 = vtanh.pop %v295
    %v301 = vpack.c.bf16 %v300, %v300
    %v303 = vsel %vm90, %v301, 0
    %305 = vmatprep.subr.bf16.mxu0 0
    %306 = vmatpush1.bf16.msra.mxu0 0
    %307 = vmatprep.subr.bf16.mxu0 0
    %308 = vmatpush1.bf16.msra.mxu0 0
    %309 = vmatprep.subr.bf16.mxu0 0
    %310 = vmatpush1.bf16.msra.mxu0 0
    %311 = vmatprep.subr.bf16.mxu0 0
    %312 = vmatpush1.bf16.msra.mxu0 0
    %313 = vmatprep.subr.bf16.mxu0 0
    %314 = vmatpush1.bf16.msra.mxu0 0
    %315 = vmatprep.subr.bf16.mxu0 0
    %316 = vmatpush1.bf16.msra.mxu0 0
    %317 = vmatprep.subr.bf16.mxu0 0
    %318 = vmatpush1.bf16.msra.mxu0 %v209
    %319 = vmatprep.subr.bf16.mxu0 0
    %320 = vmatpush1.bf16.msra.mxu0 %v208
    %321 = vmatprep.subr.bf16.mxu0 0
    %322 = vmatpush2.bf16.msra.mxu0 0
    %323 = vmatprep.subr.bf16.mxu0 0
    %324 = vmatpush2.bf16.msra.mxu0 0
    %325 = vmatprep.subr.bf16.mxu0 0
    %326 = vmatpush2.bf16.msra.mxu0 0
    %327 = vmatprep.subr.bf16.mxu0 0
    %328 = vmatpush2.bf16.msra.mxu0 0
    %329 = vmatprep.subr.bf16.mxu0 0
    %330 = vmatpush2.bf16.msra.mxu0 0
    %331 = vmatprep.subr.bf16.mxu0 0
    %332 = vmatpush2.bf16.msra.mxu0 0
    %333 = vmatprep.subr.bf16.mxu0 0
    %334 = vmatpush2.bf16.msra.mxu0 0
    %335 = vmatprep.subr.bf16.mxu0 0
    %336 = vmatpush2.bf16.msra.mxu0 0
    %337 = vmatprep.mubr.bf16.mxu0 0
    %338 = vmatmul.mubr.bf16.gmra.mxu0 %v303
    %v339 = vpop.f32.mrf.mxu0
    %v340 = vadd.f32 %v197, %v339
    %v341 = vpop.f32.mrf.mxu0
    %v342 = vpop.f32.mrf.mxu0
    %v343 = vpop.f32.mrf.mxu0
    %344 = vdwg.mxu0
    %v345 = vtanh.pop %v340
    %v346 = vpack.c.bf16 %v345, %v345
    %v348 = vsel %vm90, %v346, 0
    %350 = vmatprep.subr.bf16.mxu0 0
    %351 = vmatpush1.bf16.msra.mxu0 0
    %352 = vmatprep.subr.bf16.mxu0 0
    %353 = vmatpush1.bf16.msra.mxu0 0
    %354 = vmatprep.subr.bf16.mxu0 0
    %355 = vmatpush1.bf16.msra.mxu0 0
    %356 = vmatprep.subr.bf16.mxu0 0
    %357 = vmatpush1.bf16.msra.mxu0 0
    %358 = vmatprep.subr.bf16.mxu0 0
    %359 = vmatpush1.bf16.msra.mxu0 0
    %360 = vmatprep.subr.bf16.mxu0 0
    %361 = vmatpush1.bf16.msra.mxu0 0
    %362 = vmatprep.subr.bf16.mxu0 0
    %363 = vmatpush1.bf16.msra.mxu0 %v209
    %364 = vmatprep.subr.bf16.mxu0 0
    %365 = vmatpush1.bf16.msra.mxu0 %v208
    %366 = vmatprep.subr.bf16.mxu0 0
    %367 = vmatpush2.bf16.msra.mxu0 0
    %368 = vmatprep.subr.bf16.mxu0 0
    %369 = vmatpush2.bf16.msra.mxu0 0
    %370 = vmatprep.subr.bf16.mxu0 0
    %371 = vmatpush2.bf16.msra.mxu0 0
    %372 = vmatprep.subr.bf16.mxu0 0
    %373 = vmatpush2.bf16.msra.mxu0 0
    %374 = vmatprep.subr.bf16.mxu0 0
    %375 = vmatpush2.bf16.msra.mxu0 0
    %376 = vmatprep.subr.bf16.mxu0 0
    %377 = vmatpush2.bf16.msra.mxu0 0
    %378 = vmatprep.subr.bf16.mxu0 0
    %379 = vmatpush2.bf16.msra.mxu0 0
    %380 = vmatprep.subr.bf16.mxu0 0
    %381 = vmatpush2.bf16.msra.mxu0 0
    %382 = vmatprep.mubr.bf16.mxu0 0
    %383 = vmatmul.mubr.bf16.gmra.mxu0 %v348
    %v384 = vpop.f32.mrf.mxu0
    %v385 = vadd.f32 %v197, %v384
    %v386 = vpop.f32.mrf.mxu0
    %v387 = vpop.f32.mrf.mxu0
    %v388 = vpop.f32.mrf.mxu0
    %389 = vdwg.mxu0
    %v390 = vtanh.pop %v385
    %v391 = vpack.c.bf16 %v390, %v390
    %v393 = vsel %vm90, %v391, 0
    %395 = vmatprep.subr.bf16.mxu0 0
    %396 = vmatpush1.bf16.msra.mxu0 0
    %397 = vmatprep.subr.bf16.mxu0 0
    %398 = vmatpush1.bf16.msra.mxu0 0
    %399 = vmatprep.subr.bf16.mxu0 0
    %400 = vmatpush1.bf16.msra.mxu0 0
    %401 = vmatprep.subr.bf16.mxu0 0
    %402 = vmatpush1.bf16.msra.mxu0 0
    %403 = vmatprep.subr.bf16.mxu0 0
    %404 = vmatpush1.bf16.msra.mxu0 0
    %405 = vmatprep.subr.bf16.mxu0 0
    %406 = vmatpush1.bf16.msra.mxu0 0
    %407 = vmatprep.subr.bf16.mxu0 0
    %408 = vmatpush1.bf16.msra.mxu0 %v209
    %409 = vmatprep.subr.bf16.mxu0 0
    %410 = vmatpush1.bf16.msra.mxu0 %v208
    %411 = vmatprep.subr.bf16.mxu0 0
    %412 = vmatpush2.bf16.msra.mxu0 0
    %413 = vmatprep.subr.bf16.mxu0 0
    %414 = vmatpush2.bf16.msra.mxu0 0
    %415 = vmatprep.subr.bf16.mxu0 0
    %416 = vmatpush2.bf16.msra.mxu0 0
    %417 = vmatprep.subr.bf16.mxu0 0
    %418 = vmatpush2.bf16.msra.mxu0 0
    %419 = vmatprep.subr.bf16.mxu0 0
    %420 = vmatpush2.bf16.msra.mxu0 0
    %421 = vmatprep.subr.bf16.mxu0 0
    %422 = vmatpush2.bf16.msra.mxu0 0
    %423 = vmatprep.subr.bf16.mxu0 0
    %424 = vmatpush2.bf16.msra.mxu0 0
    %425 = vmatprep.subr.bf16.mxu0 0
    %426 = vmatpush2.bf16.msra.mxu0 0
    %427 = vmatprep.mubr.bf16.mxu0 0
    %428 = vmatmul.mubr.bf16.gmra.mxu0 %v393
    %v429 = vpop.f32.mrf.mxu0
    %v430 = vadd.f32 %v197, %v429
    %v431 = vpop.f32.mrf.mxu0
    %v432 = vpop.f32.mrf.mxu0
    %v433 = vpop.f32.mrf.mxu0
    %434 = vdwg.mxu0
    %v435 = vtanh.pop %v430
    %v436 = vpack.c.bf16 %v435, %v435
    %v438 = vsel %vm90, %v436, 0
    %440 = vmatprep.subr.bf16.mxu0 0
    %441 = vmatpush1.bf16.msra.mxu0 0
    %442 = vmatprep.subr.bf16.mxu0 0
    %443 = vmatpush1.bf16.msra.mxu0 0
    %444 = vmatprep.subr.bf16.mxu0 0
    %445 = vmatpush1.bf16.msra.mxu0 0
    %446 = vmatprep.subr.bf16.mxu0 0
    %447 = vmatpush1.bf16.msra.mxu0 0
    %448 = vmatprep.subr.bf16.mxu0 0
    %449 = vmatpush1.bf16.msra.mxu0 0
    %450 = vmatprep.subr.bf16.mxu0 0
    %451 = vmatpush1.bf16.msra.mxu0 0
    %452 = vmatprep.subr.bf16.mxu0 0
    %453 = vmatpush1.bf16.msra.mxu0 %v209
    %454 = vmatprep.subr.bf16.mxu0 0
    %455 = vmatpush1.bf16.msra.mxu0 %v208
    %456 = vmatprep.subr.bf16.mxu0 0
    %457 = vmatpush2.bf16.msra.mxu0 0
    %458 = vmatprep.subr.bf16.mxu0 0
    %459 = vmatpush2.bf16.msra.mxu0 0
    %460 = vmatprep.subr.bf16.mxu0 0
    %461 = vmatpush2.bf16.msra.mxu0 0
    %462 = vmatprep.subr.bf16.mxu0 0
    %463 = vmatpush2.bf16.msra.mxu0 0
    %464 = vmatprep.subr.bf16.mxu0 0
    %465 = vmatpush2.bf16.msra.mxu0 0
    %466 = vmatprep.subr.bf16.mxu0 0
    %467 = vmatpush2.bf16.msra.mxu0 0
    %468 = vmatprep.subr.bf16.mxu0 0
    %469 = vmatpush2.bf16.msra.mxu0 0
    %470 = vmatprep.subr.bf16.mxu0 0
    %471 = vmatpush2.bf16.msra.mxu0 0
    %472 = vmatprep.mubr.bf16.mxu0 0
    %473 = vmatmul.mubr.bf16.gmra.mxu0 %v438
    %v474 = vpop.f32.mrf.mxu0
    %v475 = vadd.f32 %v197, %v474
    %v476 = vpop.f32.mrf.mxu0
    %v477 = vpop.f32.mrf.mxu0
    %v478 = vpop.f32.mrf.mxu0
    %479 = vdwg.mxu0
    %v480 = vtanh.pop %v475
    %v481 = vpack.c.bf16 %v480, %v480
    %v483 = vsel %vm90, %v481, 0
    %485 = vmatprep.subr.bf16.mxu0 0
    %486 = vmatpush1.bf16.msra.mxu0 0
    %487 = vmatprep.subr.bf16.mxu0 0
    %488 = vmatpush1.bf16.msra.mxu0 0
    %489 = vmatprep.subr.bf16.mxu0 0
    %490 = vmatpush1.bf16.msra.mxu0 0
    %491 = vmatprep.subr.bf16.mxu0 0
    %492 = vmatpush1.bf16.msra.mxu0 0
    %493 = vmatprep.subr.bf16.mxu0 0
    %494 = vmatpush1.bf16.msra.mxu0 0
    %495 = vmatprep.subr.bf16.mxu0 0
    %496 = vmatpush1.bf16.msra.mxu0 0
    %497 = vmatprep.subr.bf16.mxu0 0
    %498 = vmatpush1.bf16.msra.mxu0 %v209
    %499 = vmatprep.subr.bf16.mxu0 0
    %500 = vmatpush1.bf16.msra.mxu0 %v208
    %501 = vmatprep.subr.bf16.mxu0 0
    %502 = vmatpush2.bf16.msra.mxu0 0
    %503 = vmatprep.subr.bf16.mxu0 0
    %504 = vmatpush2.bf16.msra.mxu0 0
    %505 = vmatprep.subr.bf16.mxu0 0
    %506 = vmatpush2.bf16.msra.mxu0 0
    %507 = vmatprep.subr.bf16.mxu0 0
    %508 = vmatpush2.bf16.msra.mxu0 0
    %509 = vmatprep.subr.bf16.mxu0 0
    %510 = vmatpush2.bf16.msra.mxu0 0
    %511 = vmatprep.subr.bf16.mxu0 0
    %512 = vmatpush2.bf16.msra.mxu0 0
    %513 = vmatprep.subr.bf16.mxu0 0
    %514 = vmatpush2.bf16.msra.mxu0 0
    %515 = vmatprep.subr.bf16.mxu0 0
    %516 = vmatpush2.bf16.msra.mxu0 0
    %517 = vmatprep.mubr.bf16.mxu0 0
    %518 = vmatmul.mubr.bf16.gmra.mxu0 %v483
    %v519 = vpop.f32.mrf.mxu0
    %v520 = vadd.f32 %v197, %v519
    %v521 = vpop.f32.mrf.mxu0
    %v522 = vpop.f32.mrf.mxu0
    %v523 = vpop.f32.mrf.mxu0
    %524 = vdwg.mxu0
    %v525 = vtanh.pop %v520
    %v526 = vpack.c.bf16 %v525, %v525
    %v528 = vlaneseq
    %v529 = vshrl.u32 %v528, 7
    %v530 = vsub.s32 0, %v529
    %v531 = vrot.slane %v75, %v530
    %v537 = vunpack.c.l.b16 %v70
    %v538 = vunpack.c.l.b16 %v71
    %v539 = vunpack.c.l.b16 %v72
    %v540 = vunpack.c.l.b16 %v73
    %v541 = vpack.c.b16 %v538, %v537
    %v542 = vpack.c.b16 %v540, %v539
    %v546 = vsel %vm90, %v526, 0
    %548 = vmatprep.subr.bf16.mxu0 0
    %549 = vmatpush1.bf16.msra.mxu0 0
    %550 = vmatprep.subr.bf16.mxu0 0
    %551 = vmatpush1.bf16.msra.mxu0 0
    %552 = vmatprep.subr.bf16.mxu0 0
    %553 = vmatpush1.bf16.msra.mxu0 0
    %554 = vmatprep.subr.bf16.mxu0 0
    %555 = vmatpush1.bf16.msra.mxu0 0
    %556 = vmatprep.subr.bf16.mxu0 0
    %557 = vmatpush1.bf16.msra.mxu0 0
    %558 = vmatprep.subr.bf16.mxu0 0
    %559 = vmatpush1.bf16.msra.mxu0 0
    %560 = vmatprep.subr.bf16.mxu0 0
    %561 = vmatpush1.bf16.msra.mxu0 %v542
    %562 = vmatprep.subr.bf16.mxu0 0
    %563 = vmatpush1.bf16.msra.mxu0 %v541
    %564 = vmatprep.subr.bf16.mxu0 0
    %565 = vmatpush2.bf16.msra.mxu0 0
    %566 = vmatprep.subr.bf16.mxu0 0
    %567 = vmatpush2.bf16.msra.mxu0 0
    %568 = vmatprep.subr.bf16.mxu0 0
    %569 = vmatpush2.bf16.msra.mxu0 0
    %570 = vmatprep.subr.bf16.mxu0 0
    %571 = vmatpush2.bf16.msra.mxu0 0
    %572 = vmatprep.subr.bf16.mxu0 0
    %573 = vmatpush2.bf16.msra.mxu0 0
    %574 = vmatprep.subr.bf16.mxu0 0
    %575 = vmatpush2.bf16.msra.mxu0 0
    %576 = vmatprep.subr.bf16.mxu0 0
    %577 = vmatpush2.bf16.msra.mxu0 0
    %578 = vmatprep.subr.bf16.mxu0 0
    %579 = vmatpush2.bf16.msra.mxu0 0
    %580 = vmatprep.mubr.bf16.mxu0 0
    %581 = vmatmul.mubr.bf16.gmra.mxu0 %v546
    %v582 = vpop.f32.mrf.mxu0
    %v583 = vadd.f32 %v531, %v582
    %v584 = vpop.f32.mrf.mxu0
    %v585 = vpop.f32.mrf.mxu0
    %v586 = vpop.f32.mrf.mxu0
    %587 = vdwg.mxu0
    %vm588 = vcmask 123904
    %589 = vst.msk [vmem:[#allocation7] sm:$0x3] %vm588, %v583
    // Predicated region
    $region46: #{tpu_custom_call.1} parent=1 // pred_check
      _
    $region47: #{tpu_custom_call.1} parent=1 // pred_check_branch
      %591 = sbr.rel (0) target = $region49
    $region48: #{tpu_custom_call.1} parent=1 // pred_region
      %s593 = ssub.s32 32, 32
      %594 = vsyncadd [#allocation4], %s593
      %s596 = sshll.u32 [#allocation7], 4
      %s597 = int_to_ptr.vmem [resolvable:$true] %s596
      %599 = dma.vmem_to_hbm [thread:$0]  %s597, 32, %s9, [#allocation4]
    $region49: #{tpu_custom_call.1} parent=1 // pred_fallthru
      _
    // Predicated region
    $region50: #{tpu_custom_call.1} parent=1 // pred_check
      _
    $region51: #{tpu_custom_call.1} parent=1 // pred_check_branch
      %601 = sbr.rel (0) target = $region53
    $region52: #{tpu_custom_call.1} parent=1 // pred_region
      %602 = dma.done [#allocation4], 32
    $region53: #{tpu_custom_call.1} parent=1 // pred_fallthru
      _
    %603 = vsyncpa [#allocation3], 1
    %604 = vsyncpa [#allocation6], 1
    %605 = vsyncpa [#allocation4], 1

</llo_original>
